<compile_context>
chip_gen: v7x
topology: tpu7x:2x2x1
jax: 0.10.0
libtpu: 0.0.40
codegen_flags: <defaults>
</compile_context>

<pallas_src>
import functools

import jax
import jax.numpy as jnp
from jax.experimental import pallas as pl
from jax.experimental.pallas import tpu as pltpu

LANE = 128
SUBLANE = 8


def _round_up(x, m):
    return ((x + m - 1) // m) * m


# ----------------------------- kernel ---------------------------------------


def _make_ppo_kernel(num_layers: int, num_outputs: int):
    """Fused [critic | actor] block-diagonal MLP chain.

    Packed lane layout of the final result: lane 0 = value, lanes
    [1, num_outputs] = mu (tanh applied), remaining lanes = zero padding.
    """

    def kernel(x_ref, *refs):
        L = num_layers
        ws = refs[0:L]          # packed bf16 weights, each (in_pad, out_pad)
        bs = refs[L:2 * L]      # packed f32 biases, each (1, out_pad)
        out_ref = refs[2 * L]   # (tile_b, out_pad) f32

        h = x_ref[...]          # bf16
        for i in range(L):
            acc = jnp.dot(h, ws[i][...], preferred_element_type=jnp.float32)
            acc = acc + bs[i][...]
            if i < L - 1:
                # ReLU, then back to bf16 so the next matmul stays bf16 on MXU.
                h = jnp.maximum(acc, 0.0).astype(x_ref.dtype)
            else:
                h = acc         # final pre-activation, f32

        # mu lanes get tanh; lane 0 (value) and zero-pad lanes pass through.
        # (1, out_pad) iota row broadcast by jnp.where -> tile_b/1 less mask work
        # than a full-tile iota + compares.  tanh rides the EUP slot.
        lane = jax.lax.broadcasted_iota(jnp.int32, (1, h.shape[1]), 1)
        mu_mask = (lane >= 1) & (lane <= num_outputs)
        out_ref[...] = jnp.where(mu_mask, jnp.tanh(h), h).astype(out_ref.dtype)

    return kernel


# --------------------------- param handling ---------------------------------


def init_linear(key, in_features, out_features):
    """PyTorch nn.Linear default init (uniform +-1/sqrt(in)), stored as (in, out)."""
    kw, kb = jax.random.split(key)
    bound = 1.0 / jnp.sqrt(jnp.float32(in_features))
    w = jax.random.uniform(kw, (in_features, out_features), jnp.float32, -bound, bound)
    b = jax.random.uniform(kb, (1, out_features), jnp.float32, -bound, bound)
    return w, b


def init_ppo_params(key, num_inputs, num_outputs, inner_dimensions, std=0.0):
    dims = list(inner_dimensions)
    critic_dims = [num_inputs] + dims + [1]
    actor_dims = [num_inputs] + dims + [num_outputs]

    keys = jax.random.split(key, 2 * (len(dims) + 1))
    cw, cb, aw, ab = [], [], [], []
    ki = 0
    for i in range(len(dims) + 1):
        w, b = init_linear(keys[ki], critic_dims[i], critic_dims[i + 1]); ki += 1
        cw.append(w); cb.append(b)
    for i in range(len(dims) + 1):
        w, b = init_linear(keys[ki], actor_dims[i], actor_dims[i + 1]); ki += 1
        aw.append(w); ab.append(b)

    log_std = jnp.ones((1, num_outputs), jnp.float32) * jnp.float32(std)
    return cw, cb, aw, ab, log_std


def pack_ppo_params(cw, cb, aw, ab, *, weight_dtype=jnp.bfloat16):
    """Fuse critic/actor layers into block-diagonal packed weights.

    Hidden ordering is [critic | actor] at every layer; the final layer produces
    [value | mu].  Hidden/output dims are zero-padded to multiples of LANE (128)
    so every matmul/store is lane-dense.  Layer 0's input dim is only padded to
    the sublane multiple (8), avoiding an 8x overpad of x's feature dim.
    Weights are stored in bf16 (MXU-native); biases stay f32.
    """
    L = len(cw)
    pw, pb = [], []
    for i in range(L):
        ci, co = cw[i].shape
        ai, ao = aw[i].shape
        if i == 0:
            # Shared input x: concat along the output axis.
            in_dim = ci
            w = jnp.concatenate([cw[i], aw[i]], axis=1)            # (in, co+ao)
        else:
            in_dim = ci + ai
            w = jnp.zeros((in_dim, co + ao), jnp.float32)
            w = w.at[:ci, :co].set(cw[i])
            w = w.at[ci:, co:].set(aw[i])
        b = jnp.concatenate([cb[i], ab[i]], axis=1)                # (1, co+ao)

        in_pad = _round_up(in_dim, SUBLANE) if i == 0 else _round_up(in_dim, LANE)
        out_pad = _round_up(co + ao, LANE)
        wp = jnp.zeros((in_pad, out_pad), jnp.float32).at[:w.shape[0], :w.shape[1]].set(w)
        bp = jnp.zeros((1, out_pad), jnp.float32).at[:, :b.shape[1]].set(b)
        pw.append(wp.astype(weight_dtype))
        pb.append(bp)                                              # f32
    return pw, pb


# ------------------------------ forward -------------------------------------


def _choose_tile_b(batch):
    """Overhead-aware batch tile: big tiles, but >= 2 grid steps when possible
    so both v7x TensorCores get a tile (the extra ~0.35 us step is a wash on
    single-TC v5e/v6e)."""
    b = max(batch, 1)
    if b <= LANE:
        return _round_up(b, SUBLANE)     # single small tile
    if b <= 2 * LANE:
        return LANE                      # two 128-row tiles
    half = -(-b // 2)
    return min(2048, _round_up(half, LANE))


@functools.partial(jax.jit,
                   static_argnames=("num_outputs", "inner_dimensions", "tile_b"))
def ppo_forward(x, packed_w, packed_b, log_std, *,
                num_outputs, inner_dimensions, tile_b=None):
    B, F = x.shape
    L = len(packed_w)
    f_in = packed_w[0].shape[0]          # round_up(F, 8): no 128-wide feature pad
    out_pad = packed_w[-1].shape[1]

    if tile_b is None:
        tile_b = _choose_tile_b(B)
    b_pad = _round_up(max(B, 1), tile_b)

    # bf16 input; only materialize a padded copy if actually needed.
    xp = x.astype(jnp.bfloat16)
    if (B != b_pad) or (F != f_in):
        xp = jnp.zeros((b_pad, f_in), jnp.bfloat16).at[:B, :F].set(xp)

    kernel = _make_ppo_kernel(L, num_outputs)

    # Cost estimate from the TRUE (unpadded) dims.
    dims = list(inner_dimensions)
    critic_dims = [F] + dims + [1]
    actor_dims = [F] + dims + [num_outputs]
    true_mults = (sum(critic_dims[i] * critic_dims[i + 1] for i in range(L))
                  + sum(actor_dims[i] * actor_dims[i + 1] for i in range(L)))
    flops = 2 * B * true_mults
    w_bytes = 2 * true_mults                                        # bf16 weights
    b_bytes = 4 * (sum(critic_dims[1:]) + sum(actor_dims[1:]))      # f32 biases
    bytes_accessed = 2 * B * F + 4 * B * (1 + num_outputs) + w_bytes + b_bytes
    cost = pl.CostEstimate(flops=flops,
                           transcendentals=B * num_outputs,
                           bytes_accessed=bytes_accessed)

    # Weights/biases are grid-invariant (index_map -> (0, 0)): Pallas DMAs them
    # once and keeps them VMEM-resident across all batch tiles.
    w_specs = [pl.BlockSpec(tuple(w.shape), lambda i: (0, 0)) for w in packed_w]
    b_specs = [pl.BlockSpec(tuple(b.shape), lambda i: (0, 0)) for b in packed_b]

    packed_out = pl.pallas_call(
        kernel,
        out_shape=jax.ShapeDtypeStruct((b_pad, out_pad), jnp.float32),
        grid=(b_pad // tile_b,),
        in_specs=[pl.BlockSpec((tile_b, f_in), lambda i: (i, 0))] + w_specs + b_specs,
        out_specs=pl.BlockSpec((tile_b, out_pad), lambda i: (i, 0)),
        compiler_params=pltpu.CompilerParams(
            dimension_semantics=("parallel",)),   # v7x: shard batch tiles over 2 TCs
        cost_estimate=cost,
    )(xp, *packed_w, *packed_b)

    value = packed_out[:B, 0:1]
    mu = packed_out[:B, 1:1 + num_outputs]
    # std = exp(log_std) is x-independent: compute/broadcast in the wrapper.
    std = jnp.broadcast_to(jnp.exp(log_std.astype(jnp.float32)), mu.shape)
    return mu, std, value


# ----------------------------- reference ------------------------------------


def ppo_forward_ref(x, cw, cb, aw, ab, log_std):
    """Pure-JAX reference on (unpacked) parameters."""
    L = len(cw)
    h = x
    for i in range(L):
        h = h @ cw[i] + cb[i]
        if i < L - 1:
            h = jnp.maximum(h, 0.0)
    value = h
    h = x
    for i in range(L):
        h = h @ aw[i] + ab[i]
        if i < L - 1:
            h = jnp.maximum(h, 0.0)
    mu = jnp.tanh(h)
    std = jnp.broadcast_to(jnp.exp(log_std), mu.shape)
    return mu, std, value


# -------------------------------- main --------------------------------------


if __name__ == "__main__":
    # Small shapes consistent with the module's forward.
    num_inputs = 16
    num_outputs = 4
    inner_dimensions = (32, 32)
    batch = 256          # 2 batch tiles of 128 (exercises the grid / 2 TCs on v7x)

    key = jax.random.PRNGKey(0)
    k_params, k_x = jax.random.split(key)

    cw, cb, aw, ab, log_std = init_ppo_params(
        k_params, num_inputs, num_outputs, inner_dimensions, std=0.0)
    x = jax.random.normal(k_x, (batch, num_inputs), jnp.float32)

    packed_w, packed_b = pack_ppo_params(cw, cb, aw, ab)

    mu, std, value = ppo_forward(x, packed_w, packed_b, log_std,
                                 num_outputs=num_outputs,
                                 inner_dimensions=inner_dimensions)
    jax.block_until_ready((mu, std, value))

    # Reference uses the same bf16-rounded weights/input the kernel sees (the
    # bf16 storage is intentional for MXU-native matmuls), f32 everything else.
    x_q = x.astype(jnp.bfloat16).astype(jnp.float32)
    cw_q = [w.astype(jnp.bfloat16).astype(jnp.float32) for w in cw]
    aw_q = [w.astype(jnp.bfloat16).astype(jnp.float32) for w in aw]
    mu_r, std_r, value_r = ppo_forward_ref(x_q, cw_q, cb, aw_q, ab, log_std)

    assert jnp.allclose(mu, mu_r, atol=2e-2), "mu mismatch"
    assert jnp.allclose(std, std_r, atol=1e-6), "std mismatch"
    assert jnp.allclose(value, value_r, atol=2e-2), "value mismatch"

    # TODO(synk): torch.distributions.Normal construction and .save() file I/O
    # have no tensor compute; downstream sampling/log_prob would be separate ops.
    print("KERNEL_OK")
</pallas_src>

<mosaic_0001>
module attributes {stable_mosaic.version = 11 : i64} {
  func.func @kernel(%arg0: i32, %arg1: memref<128x16xbf16, #tpu.memory_space<vmem>>, %arg2: memref<16x128xbf16, #tpu.memory_space<vmem>>, %arg3: memref<128x128xbf16, #tpu.memory_space<vmem>>, %arg4: memref<128x128xbf16, #tpu.memory_space<vmem>>, %arg5: memref<1x128xf32, #tpu.memory_space<vmem>>, %arg6: memref<1x128xf32, #tpu.memory_space<vmem>>, %arg7: memref<1x128xf32, #tpu.memory_space<vmem>>, %arg8: memref<128x128xf32, #tpu.memory_space<vmem>>) attributes {dimension_semantics = [#tpu.dimension_semantics<parallel>], iteration_bounds = array<i64: 2>, scalar_prefetch = 0 : i64, scratch_operands = 0 : i64, tpu.core_type = #tpu.core_type<tc>, window_params = [{transform_indices = @transform_0, window_bounds = array<i64: 128, 16>}, {pipeline_mode = #tpu.pipeline_mode<synchronous>, transform_indices = @transform_1, window_bounds = array<i64: 16, 128>}, {pipeline_mode = #tpu.pipeline_mode<synchronous>, transform_indices = @transform_2, window_bounds = array<i64: 128, 128>}, {pipeline_mode = #tpu.pipeline_mode<synchronous>, transform_indices = @transform_3, window_bounds = array<i64: 128, 128>}, {pipeline_mode = #tpu.pipeline_mode<synchronous>, transform_indices = @transform_4, window_bounds = array<i64: 1, 128>}, {pipeline_mode = #tpu.pipeline_mode<synchronous>, transform_indices = @transform_5, window_bounds = array<i64: 1, 128>}, {pipeline_mode = #tpu.pipeline_mode<synchronous>, transform_indices = @transform_6, window_bounds = array<i64: 1, 128>}, {transform_indices = @transform_7, window_bounds = array<i64: 128, 128>}]} {
    %c0 = arith.constant 0 : index
    %c0_0 = arith.constant 0 : index
    %0 = vector.load %arg1[%c0, %c0_0] : memref<128x16xbf16, #tpu.memory_space<vmem>>, vector<128x16xbf16>
    %c0_1 = arith.constant 0 : index
    %c0_2 = arith.constant 0 : index
    %1 = vector.load %arg2[%c0_1, %c0_2] : memref<16x128xbf16, #tpu.memory_space<vmem>>, vector<16x128xbf16>
    %cst = arith.constant dense<0.000000e+00> : vector<128x128xf32>
    %2 = tpu.matmul %0, %1, %cst {dimension_numbers = #tpu.dot_dimension_numbers<[1], [0], [0], [1], [0, 0, 1, 1], [], []>} : vector<128x16xbf16>, vector<16x128xbf16>, vector<128x128xf32> -> vector<128x128xf32>
    %c0_3 = arith.constant 0 : index
    %c0_4 = arith.constant 0 : index
    %3 = vector.load %arg5[%c0_3, %c0_4] : memref<1x128xf32, #tpu.memory_space<vmem>>, vector<1x128xf32>
    %4 = vector.broadcast %3 : vector<1x128xf32> to vector<128x128xf32>
    %5 = arith.addf %2, %4 : vector<128x128xf32>
    %cst_5 = arith.constant 0.000000e+00 : f32
    %6 = vector.broadcast %cst_5 : f32 to vector<128x128xf32>
    %7 = arith.maximumf %5, %6 : vector<128x128xf32>
    %8 = arith.truncf %7 : vector<128x128xf32> to vector<128x128xbf16>
    %c0_6 = arith.constant 0 : index
    %c0_7 = arith.constant 0 : index
    %9 = vector.load %arg3[%c0_6, %c0_7] : memref<128x128xbf16, #tpu.memory_space<vmem>>, vector<128x128xbf16>
    %cst_8 = arith.constant dense<0.000000e+00> : vector<128x128xf32>
    %10 = tpu.matmul %8, %9, %cst_8 {dimension_numbers = #tpu.dot_dimension_numbers<[1], [0], [0], [1], [0, 0, 1, 1], [], []>} : vector<128x128xbf16>, vector<128x128xbf16>, vector<128x128xf32> -> vector<128x128xf32>
    %c0_9 = arith.constant 0 : index
    %c0_10 = arith.constant 0 : index
    %11 = vector.load %arg6[%c0_9, %c0_10] : memref<1x128xf32, #tpu.memory_space<vmem>>, vector<1x128xf32>
    %12 = vector.broadcast %11 : vector<1x128xf32> to vector<128x128xf32>
    %13 = arith.addf %10, %12 : vector<128x128xf32>
    %cst_11 = arith.constant 0.000000e+00 : f32
    %14 = vector.broadcast %cst_11 : f32 to vector<128x128xf32>
    %15 = arith.maximumf %13, %14 : vector<128x128xf32>
    %16 = arith.truncf %15 : vector<128x128xf32> to vector<128x128xbf16>
    %c0_12 = arith.constant 0 : index
    %c0_13 = arith.constant 0 : index
    %17 = vector.load %arg4[%c0_12, %c0_13] : memref<128x128xbf16, #tpu.memory_space<vmem>>, vector<128x128xbf16>
    %cst_14 = arith.constant dense<0.000000e+00> : vector<128x128xf32>
    %18 = tpu.matmul %16, %17, %cst_14 {dimension_numbers = #tpu.dot_dimension_numbers<[1], [0], [0], [1], [0, 0, 1, 1], [], []>} : vector<128x128xbf16>, vector<128x128xbf16>, vector<128x128xf32> -> vector<128x128xf32>
    %c0_15 = arith.constant 0 : index
    %c0_16 = arith.constant 0 : index
    %19 = vector.load %arg7[%c0_15, %c0_16] : memref<1x128xf32, #tpu.memory_space<vmem>>, vector<1x128xf32>
    %20 = vector.broadcast %19 : vector<1x128xf32> to vector<128x128xf32>
    %21 = arith.addf %18, %20 : vector<128x128xf32>
    %22 = tpu.iota {dimensions = array<i32: 1>} : vector<1x128xi32>
    %c1_i32 = arith.constant 1 : i32
    %23 = vector.broadcast %c1_i32 : i32 to vector<1x128xi32>
    %24 = arith.cmpi sge, %22, %23 : vector<1x128xi32>
    %c4_i32 = arith.constant 4 : i32
    %25 = vector.broadcast %c4_i32 : i32 to vector<1x128xi32>
    %26 = arith.cmpi sle, %22, %25 : vector<1x128xi32>
    %27 = arith.andi %24, %26 : vector<1x128xi1>
    %28 = math.tanh %21 : vector<128x128xf32>
    %29 = vector.shape_cast %27 : vector<1x128xi1> to vector<1x128xi1>
    %30 = vector.broadcast %29 : vector<1x128xi1> to vector<128x128xi1>
    %31 = arith.select %30, %28, %21 : vector<128x128xi1>, vector<128x128xf32>
    %c0_17 = arith.constant 0 : index
    %c0_18 = arith.constant 0 : index
    %32 = vector.load %arg8[%c0_17, %c0_18] : memref<128x128xf32, #tpu.memory_space<vmem>>, vector<128x128xf32>
    tpu.vector_store %arg8[%c0_17, %c0_18], %31 {strides = array<i32>} : memref<128x128xf32, #tpu.memory_space<vmem>>, vector<128x128xf32>,
    return
  }
  func.func @transform_0(%arg0: i32) -> (i32, i32) {
    %c0_i32 = arith.constant 0 : i32
    %c0_i32_0 = arith.constant 0 : i32
    return %arg0, %c0_i32 : i32, i32
  }
  func.func @transform_1(%arg0: i32) -> (i32, i32) {
    %c0_i32 = arith.constant 0 : i32
    %c0_i32_0 = arith.constant 0 : i32
    %c0_i32_1 = arith.constant 0 : i32
    return %c0_i32, %c0_i32_0 : i32, i32
  }
  func.func @transform_2(%arg0: i32) -> (i32, i32) {
    %c0_i32 = arith.constant 0 : i32
    %c0_i32_0 = arith.constant 0 : i32
    %c0_i32_1 = arith.constant 0 : i32
    return %c0_i32, %c0_i32_0 : i32, i32
  }
  func.func @transform_3(%arg0: i32) -> (i32, i32) {
    %c0_i32 = arith.constant 0 : i32
    %c0_i32_0 = arith.constant 0 : i32
    %c0_i32_1 = arith.constant 0 : i32
    return %c0_i32, %c0_i32_0 : i32, i32
  }
  func.func @transform_4(%arg0: i32) -> (i32, i32) {
    %c0_i32 = arith.constant 0 : i32
    %c0_i32_0 = arith.constant 0 : i32
    %c0_i32_1 = arith.constant 0 : i32
    return %c0_i32, %c0_i32_0 : i32, i32
  }
  func.func @transform_5(%arg0: i32) -> (i32, i32) {
    %c0_i32 = arith.constant 0 : i32
    %c0_i32_0 = arith.constant 0 : i32
    %c0_i32_1 = arith.constant 0 : i32
    return %c0_i32, %c0_i32_0 : i32, i32
  }
  func.func @transform_6(%arg0: i32) -> (i32, i32) {
    %c0_i32 = arith.constant 0 : i32
    %c0_i32_0 = arith.constant 0 : i32
    %c0_i32_1 = arith.constant 0 : i32
    return %c0_i32, %c0_i32_0 : i32, i32
  }
  func.func @transform_7(%arg0: i32) -> (i32, i32) {
    %c0_i32 = arith.constant 0 : i32
    %c0_i32_0 = arith.constant 0 : i32
    return %arg0, %c0_i32 : i32, i32
  }
}

</mosaic_0001>

<llo_original>
// kernel: ppo_forward.1
$region0: #{ppo_forward.1}
  #allocation0 [shape = 'u32[]', space=smem, size = 0x4, offset = 0x4, fixed_abs, tag = 'smem constant byte address 0x4 - core index']
  #allocation1 [shape = 'u32[144,128]{1,0:T(1,128)}', space=vmem, size = 0x12000, scoped, tag = 'internal scratch']
  %s0 = inlined_call_operand.vmem [shape: bf16[256,16], index: 0, kind: input, shape index: {}]
  %s1 = inlined_call_operand.vmem [shape: bf16[16,128], index: 1, kind: input, shape index: {}]
  %s2 = inlined_call_operand.vmem [shape: bf16[128,128], index: 2, kind: input, shape index: {}]
  %s3 = inlined_call_operand.vmem [shape: bf16[128,128], index: 3, kind: input, shape index: {}]
  %s4 = inlined_call_operand.vmem [shape: f32[1,128], index: 4, kind: input, shape index: {}]
  %s5 = inlined_call_operand.vmem [shape: f32[1,128], index: 5, kind: input, shape index: {}]
  %s6 = inlined_call_operand.vmem [shape: f32[1,128], index: 6, kind: input, shape index: {}]
  %s7 = inlined_call_operand.vmem [shape: f32[256,128], index: 7, kind: output, shape index: {}]
  %s8 = sld [smem:[#allocation0]]
  $region61: #{ppo_forward.1} parent=0
    _
  %s10 = ssub.s32 1, %s8
  %s11 = scalar_select 0, %s10, %s8
  loop: start=0, step=1, limit=4
  $region2: #{ppo_forward.1} parent=0 // loop_pre_header
    _
  $region3: #{ppo_forward.1} parent=0 // loop_header
    %s13 = sphi 0, %s17
    %p14 = scmp.ge.s32.totalorder %s13, 4
    %s23 = sphi 0, %s25
    %s26 = sphi 0, %s23
    %s27 = sphi 0, %s26
    %s43 = sphi 0, %s27
    %s47 = sphi 0, %s47
    %s49 = sphi 0, %s47
    %s50 = sphi 0, %s49
    %s64 = sphi 0, %s50
    %s68 = sphi 0, %s68
    %s70 = sphi 0, %s68
    %s71 = sphi 0, %s70
    %s85 = sphi 0, %s71
    %s89 = sphi 0, %s89
    %s91 = sphi 0, %s89
    %s92 = sphi 0, %s91
    %s106 = sphi 0, %s92
    %s110 = sphi 0, %s110
    %s112 = sphi 0, %s110
    %s113 = sphi 0, %s112
    %s127 = sphi 0, %s113
    %s131 = sphi 0, %s131
    %s133 = sphi 0, %s131
    %s134 = sphi 0, %s133
    %s148 = sphi 0, %s134
    %s152 = sphi 0, %s152
    %s154 = sphi 0, %s152
    %s155 = sphi 0, %s154
    %s169 = sphi 0, %s155
    %s175 = sphi 0, %s177
    %s178 = sphi 0, %s175
    %s179 = sphi 0, %s178
    %s195 = sphi 0, %s179
  $region4: #{ppo_forward.1} parent=0 // loop_header_branch
    %16 = sbr.rel (%p14) target = $region8
  $region5: #{ppo_forward.1} parent=0 // loop_body
    %s18 = ssub.s32 %s13, 1
    %s19 = ssub.s32 %s13, 2
    %s20 = sadd.s32 %s13, 1
    %s21 = ssub.s32 %s13, %s20
    %p22 = scmp.eq.s32.totalorder %s21, 0
    %s24 = sadd.s32 %s23, 1
    %s25 = scalar_select %p22, %s23, %s24
    %p28 = pneg %p22
    %p29 = scmp.eq.s32.totalorder %s13, 1
    %p30 = por %p28, %p29
    %p31 = scmp.ne.s32.totalorder %s23, %s26
    %p32 = scmp.eq.s32.totalorder %s13, 0
    %p33 = por %p31, %p32
    %p34 = scmp.ne.s32.totalorder %s23, %s26
    %p35 = scmp.eq.s32.totalorder %s18, 1
    %p36 = por %p34, %p35
    %p37 = scmp.ne.s32.totalorder %s26, %s27
    %p38 = scmp.eq.s32.totalorder %s18, 0
    %p39 = por %p37, %p38
    %p40 = scmp.ne.s32.totalorder %s26, %s27
    %p41 = scmp.eq.s32.totalorder %s19, 1
    %p42 = por %p40, %p41
    %p44 = scmp.ne.s32.totalorder %s27, %s43
    %p45 = scmp.eq.s32.totalorder %s19, 0
    %p46 = por %p44, %p45
    %s48 = sadd.s32 %s47, 1
    %p51 = scmp.eq.s32.totalorder %s13, 1
    %p52 = scmp.ne.s32.totalorder %s47, %s49
    %p53 = scmp.eq.s32.totalorder %s13, 0
    %p54 = por %p52, %p53
    %p55 = scmp.ne.s32.totalorder %s47, %s49
    %p56 = scmp.eq.s32.totalorder %s18, 1
    %p57 = por %p55, %p56
    %p58 = scmp.ne.s32.totalorder %s49, %s50
    %p59 = scmp.eq.s32.totalorder %s18, 0
    %p60 = por %p58, %p59
    %p61 = scmp.ne.s32.totalorder %s49, %s50
    %p62 = scmp.eq.s32.totalorder %s19, 1
    %p63 = por %p61, %p62
    %p65 = scmp.ne.s32.totalorder %s50, %s64
    %p66 = scmp.eq.s32.totalorder %s19, 0
    %p67 = por %p65, %p66
    %s69 = sadd.s32 %s68, 1
    %p72 = scmp.eq.s32.totalorder %s13, 1
    %p73 = scmp.ne.s32.totalorder %s68, %s70
    %p74 = scmp.eq.s32.totalorder %s13, 0
    %p75 = por %p73, %p74
    %p76 = scmp.ne.s32.totalorder %s68, %s70
    %p77 = scmp.eq.s32.totalorder %s18, 1
    %p78 = por %p76, %p77
    %p79 = scmp.ne.s32.totalorder %s70, %s71
    %p80 = scmp.eq.s32.totalorder %s18, 0
    %p81 = por %p79, %p80
    %p82 = scmp.ne.s32.totalorder %s70, %s71
    %p83 = scmp.eq.s32.totalorder %s19, 1
    %p84 = por %p82, %p83
    %p86 = scmp.ne.s32.totalorder %s71, %s85
    %p87 = scmp.eq.s32.totalorder %s19, 0
    %p88 = por %p86, %p87
    %s90 = sadd.s32 %s89, 1
    %p93 = scmp.eq.s32.totalorder %s13, 1
    %p94 = scmp.ne.s32.totalorder %s89, %s91
    %p95 = scmp.eq.s32.totalorder %s13, 0
    %p96 = por %p94, %p95
    %p97 = scmp.ne.s32.totalorder %s89, %s91
    %p98 = scmp.eq.s32.totalorder %s18, 1
    %p99 = por %p97, %p98
    %p100 = scmp.ne.s32.totalorder %s91, %s92
    %p101 = scmp.eq.s32.totalorder %s18, 0
    %p102 = por %p100, %p101
    %p103 = scmp.ne.s32.totalorder %s91, %s92
    %p104 = scmp.eq.s32.totalorder %s19, 1
    %p105 = por %p103, %p104
    %p107 = scmp.ne.s32.totalorder %s92, %s106
    %p108 = scmp.eq.s32.totalorder %s19, 0
    %p109 = por %p107, %p108
    %s111 = sadd.s32 %s110, 1
    %p114 = scmp.eq.s32.totalorder %s13, 1
    %p115 = scmp.ne.s32.totalorder %s110, %s112
    %p116 = scmp.eq.s32.totalorder %s13, 0
    %p117 = por %p115, %p116
    %p118 = scmp.ne.s32.totalorder %s110, %s112
    %p119 = scmp.eq.s32.totalorder %s18, 1
    %p120 = por %p118, %p119
    %p121 = scmp.ne.s32.totalorder %s112, %s113
    %p122 = scmp.eq.s32.totalorder %s18, 0
    %p123 = por %p121, %p122
    %p124 = scmp.ne.s32.totalorder %s112, %s113
    %p125 = scmp.eq.s32.totalorder %s19, 1
    %p126 = por %p124, %p125
    %p128 = scmp.ne.s32.totalorder %s113, %s127
    %p129 = scmp.eq.s32.totalorder %s19, 0
    %p130 = por %p128, %p129
    %s132 = sadd.s32 %s131, 1
    %p135 = scmp.eq.s32.totalorder %s13, 1
    %p136 = scmp.ne.s32.totalorder %s131, %s133
    %p137 = scmp.eq.s32.totalorder %s13, 0
    %p138 = por %p136, %p137
    %p139 = scmp.ne.s32.totalorder %s131, %s133
    %p140 = scmp.eq.s32.totalorder %s18, 1
    %p141 = por %p139, %p140
    %p142 = scmp.ne.s32.totalorder %s133, %s134
    %p143 = scmp.eq.s32.totalorder %s18, 0
    %p144 = por %p142, %p143
    %p145 = scmp.ne.s32.totalorder %s133, %s134
    %p146 = scmp.eq.s32.totalorder %s19, 1
    %p147 = por %p145, %p146
    %p149 = scmp.ne.s32.totalorder %s134, %s148
    %p150 = scmp.eq.s32.totalorder %s19, 0
    %p151 = por %p149, %p150
    %s153 = sadd.s32 %s152, 1
    %p156 = scmp.eq.s32.totalorder %s13, 1
    %p157 = scmp.ne.s32.totalorder %s152, %s154
    %p158 = scmp.eq.s32.totalorder %s13, 0
    %p159 = por %p157, %p158
    %p160 = scmp.ne.s32.totalorder %s152, %s154
    %p161 = scmp.eq.s32.totalorder %s18, 1
    %p162 = por %p160, %p161
    %p163 = scmp.ne.s32.totalorder %s154, %s155
    %p164 = scmp.eq.s32.totalorder %s18, 0
    %p165 = por %p163, %p164
    %p166 = scmp.ne.s32.totalorder %s154, %s155
    %p167 = scmp.eq.s32.totalorder %s19, 1
    %p168 = por %p166, %p167
    %p170 = scmp.ne.s32.totalorder %s155, %s169
    %p171 = scmp.eq.s32.totalorder %s19, 0
    %p172 = por %p170, %p171
    %s173 = ssub.s32 %s13, %s20
    %p174 = scmp.eq.s32.totalorder %s173, 0
    %s176 = sadd.s32 %s175, 1
    %s177 = scalar_select %p174, %s175, %s176
    %p180 = pneg %p174
    %p181 = scmp.eq.s32.totalorder %s13, 1
    %p182 = por %p180, %p181
    %p183 = scmp.ne.s32.totalorder %s175, %s178
    %p184 = scmp.eq.s32.totalorder %s13, 0
    %p185 = por %p183, %p184
    %p186 = scmp.ne.s32.totalorder %s175, %s178
    %p187 = scmp.eq.s32.totalorder %s18, 1
    %p188 = por %p186, %p187
    %p189 = scmp.ne.s32.totalorder %s178, %s179
    %p190 = scmp.eq.s32.totalorder %s18, 0
    %p191 = por %p189, %p190
    %p192 = scmp.ne.s32.totalorder %s178, %s179
    %p193 = scmp.eq.s32.totalorder %s19, 1
    %p194 = por %p192, %p193
    %p196 = scmp.ne.s32.totalorder %s179, %s195
    %p197 = scmp.eq.s32.totalorder %s19, 0
    %p198 = por %p196, %p197
    %p199 = scmp.le.s32.totalorder 1, %s13
    %p200 = scmp.lt.s32.totalorder %s13, 3
    %p201 = pnand %p199, %p200
    %p202 = pneg %p201
    // Predicated region
    $region9: #{ppo_forward.1} parent=5 // pred_check
      _
    $region10: #{ppo_forward.1} parent=5 // pred_check_branch
      %204 = sbr.rel (%p201) target = $region12
    $region11: #{ppo_forward.1} parent=5 // pred_region
      %s205 = ssub.s32 %s13, 1
      // Predicated region
      $region13: #{ppo_forward.1} parent=11 // pred_check
        %p206 = pneg %p60
      $region14: #{ppo_forward.1} parent=11 // pred_check_branch
        %208 = sbr.rel (%p206) target = $region16
      $region15: #{ppo_forward.1} parent=11 // pred_region
        _
      $region16: #{ppo_forward.1} parent=11 // pred_fallthru
        _
      // Predicated region
      $region17: #{ppo_forward.1} parent=11 // pred_check
        %p209 = pneg %p81
      $region18: #{ppo_forward.1} parent=11 // pred_check_branch
        %211 = sbr.rel (%p209) target = $region20
      $region19: #{ppo_forward.1} parent=11 // pred_region
        _
      $region20: #{ppo_forward.1} parent=11 // pred_fallthru
        _
      // Predicated region
      $region21: #{ppo_forward.1} parent=11 // pred_check
        %p212 = pneg %p102
      $region22: #{ppo_forward.1} parent=11 // pred_check_branch
        %214 = sbr.rel (%p212) target = $region24
      $region23: #{ppo_forward.1} parent=11 // pred_region
        _
      $region24: #{ppo_forward.1} parent=11 // pred_fallthru
        _
      // Predicated region
      $region25: #{ppo_forward.1} parent=11 // pred_check
        %p215 = pneg %p123
      $region26: #{ppo_forward.1} parent=11 // pred_check_branch
        %217 = sbr.rel (%p215) target = $region28
      $region27: #{ppo_forward.1} parent=11 // pred_region
        _
      $region28: #{ppo_forward.1} parent=11 // pred_fallthru
        _
      // Predicated region
      $region29: #{ppo_forward.1} parent=11 // pred_check
        %p218 = pneg %p144
      $region30: #{ppo_forward.1} parent=11 // pred_check_branch
        %220 = sbr.rel (%p218) target = $region32
      $region31: #{ppo_forward.1} parent=11 // pred_region
        _
      $region32: #{ppo_forward.1} parent=11 // pred_fallthru
        _
      // Predicated region
      $region33: #{ppo_forward.1} parent=11 // pred_check
        %p221 = pneg %p165
      $region34: #{ppo_forward.1} parent=11 // pred_check_branch
        %223 = sbr.rel (%p221) target = $region36
      $region35: #{ppo_forward.1} parent=11 // pred_region
        _
      $region36: #{ppo_forward.1} parent=11 // pred_fallthru
        _
    $region12: #{ppo_forward.1} parent=5 // pred_fallthru
      _
    %p224 = scmp.lt.s32.totalorder %s13, 2
    // Predicated region
    $region37: #{ppo_forward.1} parent=5 // pred_check
      %p225 = pneg %p224
    $region38: #{ppo_forward.1} parent=5 // pred_check_branch
      %227 = sbr.rel (%p225) target = $region40
    $region39: #{ppo_forward.1} parent=5 // pred_region
      // Predicated region
      $region41: #{ppo_forward.1} parent=39 // pred_check
        %p228 = pneg %p33
      $region42: #{ppo_forward.1} parent=39 // pred_check_branch
        %230 = sbr.rel (%p228) target = $region44
      $region43: #{ppo_forward.1} parent=39 // pred_region
        %s231 = smul.u32 16, %s13
        %p232 = scmp.lt.s32.totalorder %s231, 31
        %s233 = scalar_select %p232, %s231, 31
        %s234 = smul.addr %s233, 4
        %s235 = scalar_lea.vmem %s0, %s234
        %s236 = smul.u32 16, %s13
      $region44: #{ppo_forward.1} parent=39 // pred_fallthru
        _
    $region40: #{ppo_forward.1} parent=5 // pred_fallthru
      _
    %p237 = scmp.le.s32.totalorder 1, %s13
    %p238 = scmp.lt.s32.totalorder %s13, 3
    %p239 = pnand %p237, %p238
    %p240 = pneg %p239
    // Predicated region
    $region45: #{ppo_forward.1} parent=5 // pred_check
      _
    $region46: #{ppo_forward.1} parent=5 // pred_check_branch
      %242 = sbr.rel (%p239) target = $region48
    $region47: #{ppo_forward.1} parent=5 // pred_region
      %s243 = ssub.s32 %s13, 1
      %s244 = smul.u32 16, %s18
      %p245 = scmp.lt.s32.totalorder %s244, 31
      %s246 = scalar_select %p245, %s244, 31
      %s247 = smul.addr %s246, 4
      %s248 = scalar_lea.vmem %s0, %s247
      %p249 = pneg %p39
      %p250 = pneg %p36
      %p251 = pneg %p60
      %p252 = pneg %p57
      %p253 = pneg %p81
      %p254 = pneg %p78
      %p255 = pneg %p102
      %p256 = pneg %p99
      %p257 = pneg %p123
      %p258 = pneg %p120
      %p259 = pneg %p144
      %p260 = pneg %p141
      %p261 = pneg %p165
      %p262 = pneg %p162
      %p263 = pneg %p191
      %p264 = pneg %p188
      %s265 = smul.u32 16, %s18
      %p266 = scmp.lt.s32.totalorder %s265, 31
      %s267 = scalar_select %p266, %s265, 31
      %s268 = smul.addr %s267, 8
      %s269 = scalar_lea.vmem %s7, %s268
      %s270 = smul.u32 16, %s18
      %p271 = scmp.lt.s32.totalorder %s270, 31
      %s272 = scalar_select %p271, %s270, 31
      %s273 = smul.addr %s272, 4
      %s274 = scalar_lea.vmem %s0, %s273
      %s275 = smul.u32 16, %s18
      %s276 = smul.u32 16, %s18
      %p277 = scmp.lt.s32.totalorder %s276, 31
      %s278 = scalar_select %p277, %s276, 31
      %s279 = smul.addr %s278, 8
      %s280 = scalar_lea.vmem %s7, %s279
      %s281 = smul.u32 16, %s18
      %v283 = vld [vmem:[%s274] sm:$0xf]
      %v284 = vld [vmem:[%s274 + $0x4] sm:$0xf]
      %v285 = vld [vmem:[%s274 + $0x8] sm:$0xf]
      %v286 = vld [vmem:[%s274 + $0xc] sm:$0xf]
      %v287 = vld [vmem:[%s274 + $0x10] sm:$0xf]
      %v288 = vld [vmem:[%s274 + $0x14] sm:$0xf]
      %v289 = vld [vmem:[%s274 + $0x18] sm:$0xf]
      %v290 = vld [vmem:[%s274 + $0x1c] sm:$0xf]
      %v291 = vld [vmem:[%s274 + $0x20] sm:$0xf]
      %v292 = vld [vmem:[%s274 + $0x24] sm:$0xf]
      %v293 = vld [vmem:[%s274 + $0x28] sm:$0xf]
      %v294 = vld [vmem:[%s274 + $0x2c] sm:$0xf]
      %v295 = vld [vmem:[%s274 + $0x30] sm:$0xf]
      %v296 = vld [vmem:[%s274 + $0x34] sm:$0xf]
      %v297 = vld [vmem:[%s274 + $0x38] sm:$0xf]
      %v298 = vld [vmem:[%s274 + $0x3c] sm:$0xf]
      %v299 = vld [vmem:[%s1] sm:$0xf]
      %v300 = vld [vmem:[%s1 + $0x4] sm:$0xf]
      %v301 = vld [vmem:[%s4] sm:$0x1]
      %v303 = vlaneseq
      %v304 = vshrl.u32 %v303, 7
      %v305 = vsub.s32 0, %v304
      %v306 = vrot.slane %v301, %v305
      %v324 = vunpack.c.l.b16 %v283
      %v325 = vunpack.c.l.b16 %v284
      %v326 = vunpack.c.l.b16 %v285
      %v327 = vunpack.c.l.b16 %v286
      %v328 = vunpack.c.l.b16 %v287
      %v329 = vunpack.c.l.b16 %v288
      %v330 = vunpack.c.l.b16 %v289
      %v331 = vunpack.c.l.b16 %v290
      %v332 = vunpack.c.l.b16 %v291
      %v333 = vunpack.c.l.b16 %v292
      %v334 = vunpack.c.l.b16 %v293
      %v335 = vunpack.c.l.b16 %v294
      %v336 = vunpack.c.l.b16 %v295
      %v337 = vunpack.c.l.b16 %v296
      %v338 = vunpack.c.l.b16 %v297
      %v339 = vunpack.c.l.b16 %v298
      %v340 = vpack.c.b16 %v325, %v324
      %v341 = vpack.c.b16 %v327, %v326
      %v342 = vpack.c.b16 %v329, %v328
      %v343 = vpack.c.b16 %v331, %v330
      %v344 = vpack.c.b16 %v333, %v332
      %v345 = vpack.c.b16 %v335, %v334
      %v346 = vpack.c.b16 %v337, %v336
      %v347 = vpack.c.b16 %v339, %v338
      %v350 = vunpack.c.l.b16 %v299
      %v351 = vunpack.c.l.b16 %v300
      %v352 = vpack.c.b16 %v351, %v350
      %vm354 = vcmask 130048
      %v356 = vsel %vm354, %v340, 0
      %v359 = vsel %vm354, %v341, 0
      %v362 = vsel %vm354, %v342, 0
      %v365 = vsel %vm354, %v343, 0
      %v368 = vsel %vm354, %v344, 0
      %v371 = vsel %vm354, %v345, 0
      %v374 = vsel %vm354, %v346, 0
      %v377 = vsel %vm354, %v347, 0
      %379 = vmatprep.subr.bf16.mxu0 0
      %380 = vmatpush1.bf16.msra.mxu0 %v352
      %381 = vmatprep.subr.bf16.mxu0 0
      %382 = vmatpush1.bf16.msra.mxu0 0
      %383 = vmatprep.subr.bf16.mxu0 0
      %384 = vmatpush1.bf16.msra.mxu0 0
      %385 = vmatprep.subr.bf16.mxu0 0
      %386 = vmatpush1.bf16.msra.mxu0 0
      %387 = vmatprep.subr.bf16.mxu0 0
      %388 = vmatpush1.bf16.msra.mxu0 0
      %389 = vmatprep.subr.bf16.mxu0 0
      %390 = vmatpush1.bf16.msra.mxu0 0
      %391 = vmatprep.subr.bf16.mxu0 0
      %392 = vmatpush1.bf16.msra.mxu0 0
      %393 = vmatprep.subr.bf16.mxu0 0
      %394 = vmatpush1.bf16.msra.mxu0 0
      %395 = vmatprep.subr.bf16.mxu0 0
      %396 = vmatpush1.bf16.msra.mxu0 0
      %397 = vmatprep.subr.bf16.mxu0 0
      %398 = vmatpush1.bf16.msra.mxu0 0
      %399 = vmatprep.subr.bf16.mxu0 0
      %400 = vmatpush1.bf16.msra.mxu0 0
      %401 = vmatprep.subr.bf16.mxu0 0
      %402 = vmatpush1.bf16.msra.mxu0 0
      %403 = vmatprep.subr.bf16.mxu0 0
      %404 = vmatpush1.bf16.msra.mxu0 0
      %405 = vmatprep.subr.bf16.mxu0 0
      %406 = vmatpush1.bf16.msra.mxu0 0
      %407 = vmatprep.subr.bf16.mxu0 0
      %408 = vmatpush1.bf16.msra.mxu0 0
      %409 = vmatprep.subr.bf16.mxu0 0
      %410 = vmatpush1.bf16.msra.mxu0 0
      %411 = vmatprep.mubr.bf16.mxu0 0
      %412 = vmatmul.mubr.bf16.gmra.mrb[0].mxu0 %v356
      %v413 = vpop.f32.mrb[0].mxu0
      %v414 = vadd.f32 %v306, %v413
      %v415 = vpop.f32.mrb[0].mxu0
      %v416 = vpop.f32.mrb[0].mxu0
      %v417 = vadd.f32 %v306, %v416
      %v418 = vpop.f32.mrb[0].mxu0
      %419 = vmatprep.mubr.bf16.mxu0 0
      %420 = vmatmul.mubr.bf16.gmra.mrb[0].mxu0 %v359
      %v421 = vpop.f32.mrb[0].mxu0
      %v422 = vadd.f32 %v306, %v421
      %v423 = vpop.f32.mrb[0].mxu0
      %v424 = vpop.f32.mrb[0].mxu0
      %v425 = vadd.f32 %v306, %v424
      %v426 = vpop.f32.mrb[0].mxu0
      %427 = vmatprep.mubr.bf16.mxu0 0
      %428 = vmatmul.mubr.bf16.gmra.mrb[0].mxu0 %v362
      %v429 = vpop.f32.mrb[0].mxu0
      %v430 = vadd.f32 %v306, %v429
      %v431 = vpop.f32.mrb[0].mxu0
      %v432 = vpop.f32.mrb[0].mxu0
      %v433 = vadd.f32 %v306, %v432
      %v434 = vpop.f32.mrb[0].mxu0
      %435 = vmatprep.mubr.bf16.mxu0 0
      %436 = vmatmul.mubr.bf16.gmra.mrb[0].mxu0 %v365
      %v437 = vpop.f32.mrb[0].mxu0
      %v438 = vadd.f32 %v306, %v437
      %v439 = vpop.f32.mrb[0].mxu0
      %v440 = vpop.f32.mrb[0].mxu0
      %v441 = vadd.f32 %v306, %v440
      %v442 = vpop.f32.mrb[0].mxu0
      %443 = vmatprep.mubr.bf16.mxu0 0
      %444 = vmatmul.mubr.bf16.gmra.mrb[0].mxu0 %v368
      %v445 = vpop.f32.mrb[0].mxu0
      %v446 = vadd.f32 %v306, %v445
      %v447 = vpop.f32.mrb[0].mxu0
      %v448 = vpop.f32.mrb[0].mxu0
      %v449 = vadd.f32 %v306, %v448
      %v450 = vpop.f32.mrb[0].mxu0
      %451 = vmatprep.mubr.bf16.mxu0 0
      %452 = vmatmul.mubr.bf16.gmra.mrb[0].mxu0 %v371
      %v453 = vpop.f32.mrb[0].mxu0
      %v454 = vadd.f32 %v306, %v453
      %v455 = vpop.f32.mrb[0].mxu0
      %v456 = vpop.f32.mrb[0].mxu0
      %v457 = vadd.f32 %v306, %v456
      %v458 = vpop.f32.mrb[0].mxu0
      %459 = vmatprep.mubr.bf16.mxu0 0
      %460 = vmatmul.mubr.bf16.gmra.mrb[0].mxu0 %v374
      %v461 = vpop.f32.mrb[0].mxu0
      %v462 = vadd.f32 %v306, %v461
      %v463 = vpop.f32.mrb[0].mxu0
      %v464 = vpop.f32.mrb[0].mxu0
      %v465 = vadd.f32 %v306, %v464
      %v466 = vpop.f32.mrb[0].mxu0
      %467 = vmatprep.mubr.bf16.mxu0 0
      %468 = vmatmul.mubr.bf16.gmra.mrb[0].mxu0 %v377
      %v469 = vpop.f32.mrb[0].mxu0
      %v470 = vadd.f32 %v306, %v469
      %v471 = vpop.f32.mrb[0].mxu0
      %v472 = vpop.f32.mrb[0].mxu0
      %v473 = vadd.f32 %v306, %v472
      %v474 = vpop.f32.mrb[0].mxu0
      %475 = vdwg.mxu0
      %v476 = vmax.f32 %v414, 0.0
      %v477 = vmax.f32 %v417, 0.0
      %v478 = vmax.f32 %v422, 0.0
      %v479 = vmax.f32 %v425, 0.0
      %v480 = vmax.f32 %v430, 0.0
      %v481 = vmax.f32 %v433, 0.0
      %v482 = vmax.f32 %v438, 0.0
      %v483 = vmax.f32 %v441, 0.0
      %v484 = vmax.f32 %v446, 0.0
      %v485 = vmax.f32 %v449, 0.0
      %v486 = vmax.f32 %v454, 0.0
      %v487 = vmax.f32 %v457, 0.0
      %v488 = vmax.f32 %v462, 0.0
      %v489 = vmax.f32 %v465, 0.0
      %v490 = vmax.f32 %v470, 0.0
      %v491 = vmax.f32 %v473, 0.0
      %v492 = vpack.c.bf16 %v477, %v476
      %v493 = vpack.c.bf16 %v479, %v478
      %v494 = vpack.c.bf16 %v481, %v480
      %v495 = vpack.c.bf16 %v483, %v482
      %v496 = vpack.c.bf16 %v485, %v484
      %v497 = vpack.c.bf16 %v487, %v486
      %v498 = vpack.c.bf16 %v489, %v488
      %v499 = vpack.c.bf16 %v491, %v490
      %v500 = vld [vmem:[%s2] sm:$0xf]
      %v501 = vld [vmem:[%s2 + $0x4] sm:$0xf]
      %v502 = vld [vmem:[%s2 + $0x8] sm:$0xf]
      %v503 = vld [vmem:[%s2 + $0xc] sm:$0xf]
      %v504 = vld [vmem:[%s2 + $0x10] sm:$0xf]
      %v505 = vld [vmem:[%s2 + $0x14] sm:$0xf]
      %v506 = vld [vmem:[%s2 + $0x18] sm:$0xf]
      %v507 = vld [vmem:[%s2 + $0x1c] sm:$0xf]
      %v508 = vld [vmem:[%s2 + $0x20] sm:$0xf]
      %v509 = vld [vmem:[%s2 + $0x24] sm:$0xf]
      %v510 = vld [vmem:[%s2 + $0x28] sm:$0xf]
      %v511 = vld [vmem:[%s2 + $0x2c] sm:$0xf]
      %v512 = vld [vmem:[%s2 + $0x30] sm:$0xf]
      %v513 = vld [vmem:[%s2 + $0x34] sm:$0xf]
      %v514 = vld [vmem:[%s2 + $0x38] sm:$0xf]
      %v515 = vld [vmem:[%s2 + $0x3c] sm:$0xf]
      %v516 = vld [vmem:[%s5] sm:$0x1]
      %v518 = vlaneseq
      %v519 = vshrl.u32 %v518, 7
      %v520 = vsub.s32 0, %v519
      %v521 = vrot.slane %v516, %v520
      %v539 = vunpack.c.l.b16 %v500
      %v540 = vunpack.c.l.b16 %v501
      %v541 = vunpack.c.l.b16 %v502
      %v542 = vunpack.c.l.b16 %v503
      %v543 = vunpack.c.l.b16 %v504
      %v544 = vunpack.c.l.b16 %v505
      %v545 = vunpack.c.l.b16 %v506
      %v546 = vunpack.c.l.b16 %v507
      %v547 = vunpack.c.l.b16 %v508
      %v548 = vunpack.c.l.b16 %v509
      %v549 = vunpack.c.l.b16 %v510
      %v550 = vunpack.c.l.b16 %v511
      %v551 = vunpack.c.l.b16 %v512
      %v552 = vunpack.c.l.b16 %v513
      %v553 = vunpack.c.l.b16 %v514
      %v554 = vunpack.c.l.b16 %v515
      %v555 = vpack.c.b16 %v540, %v539
      %v556 = vpack.c.b16 %v542, %v541
      %v557 = vpack.c.b16 %v544, %v543
      %v558 = vpack.c.b16 %v546, %v545
      %v559 = vpack.c.b16 %v548, %v547
      %v560 = vpack.c.b16 %v550, %v549
      %v561 = vpack.c.b16 %v552, %v551
      %v562 = vpack.c.b16 %v554, %v553
      %571 = vmatprep.subr.bf16.mxu0 0
      %572 = vmatpush1.bf16.msra.mxu0 %v555
      %573 = vmatprep.subr.bf16.mxu0 0
      %574 = vmatpush1.bf16.msra.mxu0 %v556
      %575 = vmatprep.subr.bf16.mxu0 0
      %576 = vmatpush1.bf16.msra.mxu0 %v557
      %577 = vmatprep.subr.bf16.mxu0 0
      %578 = vmatpush1.bf16.msra.mxu0 %v558
      %579 = vmatprep.subr.bf16.mxu0 0
      %580 = vmatpush1.bf16.msra.mxu0 %v559
      %581 = vmatprep.subr.bf16.mxu0 0
      %582 = vmatpush1.bf16.msra.mxu0 %v560
      %583 = vmatprep.subr.bf16.mxu0 0
      %584 = vmatpush1.bf16.msra.mxu0 %v561
      %585 = vmatprep.subr.bf16.mxu0 0
      %586 = vmatpush1.bf16.msra.mxu0 %v562
      %587 = vmatprep.subr.bf16.mxu0 0
      %588 = vmatpush1.bf16.msra.mxu0 0
      %589 = vmatprep.subr.bf16.mxu0 0
      %590 = vmatpush1.bf16.msra.mxu0 0
      %591 = vmatprep.subr.bf16.mxu0 0
      %592 = vmatpush1.bf16.msra.mxu0 0
      %593 = vmatprep.subr.bf16.mxu0 0
      %594 = vmatpush1.bf16.msra.mxu0 0
      %595 = vmatprep.subr.bf16.mxu0 0
      %596 = vmatpush1.bf16.msra.mxu0 0
      %597 = vmatprep.subr.bf16.mxu0 0
      %598 = vmatpush1.bf16.msra.mxu0 0
      %599 = vmatprep.subr.bf16.mxu0 0
      %600 = vmatpush1.bf16.msra.mxu0 0
      %601 = vmatprep.subr.bf16.mxu0 0
      %602 = vmatpush1.bf16.msra.mxu0 0
      %603 = vmatprep.mubr.bf16.mxu0 0
      %604 = vmatmul.mubr.bf16.gmra.mrb[0].mxu0 %v492
      %v605 = vpop.f32.mrb[0].mxu0
      %v606 = vadd.f32 %v521, %v605
      %v607 = vpop.f32.mrb[0].mxu0
      %v608 = vpop.f32.mrb[0].mxu0
      %v609 = vadd.f32 %v521, %v608
      %v610 = vpop.f32.mrb[0].mxu0
      %611 = vmatprep.mubr.bf16.mxu0 0
      %612 = vmatmul.mubr.bf16.gmra.mrb[0].mxu0 %v493
      %v613 = vpop.f32.mrb[0].mxu0
      %v614 = vadd.f32 %v521, %v613
      %v615 = vpop.f32.mrb[0].mxu0
      %v616 = vpop.f32.mrb[0].mxu0
      %v617 = vadd.f32 %v521, %v616
      %v618 = vpop.f32.mrb[0].mxu0
      %619 = vmatprep.mubr.bf16.mxu0 0
      %620 = vmatmul.mubr.bf16.gmra.mrb[0].mxu0 %v494
      %v621 = vpop.f32.mrb[0].mxu0
      %v622 = vadd.f32 %v521, %v621
      %v623 = vpop.f32.mrb[0].mxu0
      %v624 = vpop.f32.mrb[0].mxu0
      %v625 = vadd.f32 %v521, %v624
      %v626 = vpop.f32.mrb[0].mxu0
      %627 = vmatprep.mubr.bf16.mxu0 0
      %628 = vmatmul.mubr.bf16.gmra.mrb[0].mxu0 %v495
      %v629 = vpop.f32.mrb[0].mxu0
      %v630 = vadd.f32 %v521, %v629
      %v631 = vpop.f32.mrb[0].mxu0
      %v632 = vpop.f32.mrb[0].mxu0
      %v633 = vadd.f32 %v521, %v632
      %v634 = vpop.f32.mrb[0].mxu0
      %635 = vmatprep.mubr.bf16.mxu0 0
      %636 = vmatmul.mubr.bf16.gmra.mrb[0].mxu0 %v496
      %v637 = vpop.f32.mrb[0].mxu0
      %v638 = vadd.f32 %v521, %v637
      %v639 = vpop.f32.mrb[0].mxu0
      %v640 = vpop.f32.mrb[0].mxu0
      %v641 = vadd.f32 %v521, %v640
      %v642 = vpop.f32.mrb[0].mxu0
      %643 = vmatprep.mubr.bf16.mxu0 0
      %644 = vmatmul.mubr.bf16.gmra.mrb[0].mxu0 %v497
      %v645 = vpop.f32.mrb[0].mxu0
      %v646 = vadd.f32 %v521, %v645
      %v647 = vpop.f32.mrb[0].mxu0
      %v648 = vpop.f32.mrb[0].mxu0
      %v649 = vadd.f32 %v521, %v648
      %v650 = vpop.f32.mrb[0].mxu0
      %651 = vmatprep.mubr.bf16.mxu0 0
      %652 = vmatmul.mubr.bf16.gmra.mrb[0].mxu0 %v498
      %v653 = vpop.f32.mrb[0].mxu0
      %v654 = vadd.f32 %v521, %v653
      %v655 = vpop.f32.mrb[0].mxu0
      %v656 = vpop.f32.mrb[0].mxu0
      %v657 = vadd.f32 %v521, %v656
      %v658 = vpop.f32.mrb[0].mxu0
      %659 = vmatprep.mubr.bf16.mxu0 0
      %660 = vmatmul.mubr.bf16.gmra.mrb[0].mxu0 %v499
      %v661 = vpop.f32.mrb[0].mxu0
      %v662 = vadd.f32 %v521, %v661
      %v663 = vpop.f32.mrb[0].mxu0
      %v664 = vpop.f32.mrb[0].mxu0
      %v665 = vadd.f32 %v521, %v664
      %v666 = vpop.f32.mrb[0].mxu0
      %667 = vdwg.mxu0
      %v668 = vmax.f32 %v606, 0.0
      %v669 = vmax.f32 %v609, 0.0
      %v670 = vmax.f32 %v614, 0.0
      %v671 = vmax.f32 %v617, 0.0
      %v672 = vmax.f32 %v622, 0.0
      %v673 = vmax.f32 %v625, 0.0
      %v674 = vmax.f32 %v630, 0.0
      %v675 = vmax.f32 %v633, 0.0
      %v676 = vmax.f32 %v638, 0.0
      %v677 = vmax.f32 %v641, 0.0
      %v678 = vmax.f32 %v646, 0.0
      %v679 = vmax.f32 %v649, 0.0
      %v680 = vmax.f32 %v654, 0.0
      %v681 = vmax.f32 %v657, 0.0
      %v682 = vmax.f32 %v662, 0.0
      %v683 = vmax.f32 %v665, 0.0
      %v684 = vpack.c.bf16 %v669, %v668
      %v685 = vpack.c.bf16 %v671, %v670
      %v686 = vpack.c.bf16 %v673, %v672
      %v687 = vpack.c.bf16 %v675, %v674
      %v688 = vpack.c.bf16 %v677, %v676
      %v689 = vpack.c.bf16 %v679, %v678
      %v690 = vpack.c.bf16 %v681, %v680
      %v691 = vpack.c.bf16 %v683, %v682
      %v692 = vld [vmem:[%s3] sm:$0xf]
      %v693 = vld [vmem:[%s3 + $0x4] sm:$0xf]
      %v694 = vld [vmem:[%s3 + $0x8] sm:$0xf]
      %v695 = vld [vmem:[%s3 + $0xc] sm:$0xf]
      %v696 = vld [vmem:[%s3 + $0x10] sm:$0xf]
      %v697 = vld [vmem:[%s3 + $0x14] sm:$0xf]
      %v698 = vld [vmem:[%s3 + $0x18] sm:$0xf]
      %v699 = vld [vmem:[%s3 + $0x1c] sm:$0xf]
      %v700 = vld [vmem:[%s3 + $0x20] sm:$0xf]
      %v701 = vld [vmem:[%s3 + $0x24] sm:$0xf]
      %v702 = vld [vmem:[%s3 + $0x28] sm:$0xf]
      %v703 = vld [vmem:[%s3 + $0x2c] sm:$0xf]
      %v704 = vld [vmem:[%s3 + $0x30] sm:$0xf]
      %v705 = vld [vmem:[%s3 + $0x34] sm:$0xf]
      %v706 = vld [vmem:[%s3 + $0x38] sm:$0xf]
      %v707 = vld [vmem:[%s3 + $0x3c] sm:$0xf]
      %v708 = vld [vmem:[%s6] sm:$0x1]
      %v710 = vlaneseq
      %v711 = vshrl.u32 %v710, 7
      %v712 = vsub.s32 0, %v711
      %v713 = vrot.slane %v708, %v712
      %v731 = vunpack.c.l.b16 %v692
      %v732 = vunpack.c.l.b16 %v693
      %v733 = vunpack.c.l.b16 %v694
      %v734 = vunpack.c.l.b16 %v695
      %v735 = vunpack.c.l.b16 %v696
      %v736 = vunpack.c.l.b16 %v697
      %v737 = vunpack.c.l.b16 %v698
      %v738 = vunpack.c.l.b16 %v699
      %v739 = vunpack.c.l.b16 %v700
      %v740 = vunpack.c.l.b16 %v701
      %v741 = vunpack.c.l.b16 %v702
      %v742 = vunpack.c.l.b16 %v703
      %v743 = vunpack.c.l.b16 %v704
      %v744 = vunpack.c.l.b16 %v705
      %v745 = vunpack.c.l.b16 %v706
      %v746 = vunpack.c.l.b16 %v707
      %v747 = vpack.c.b16 %v732, %v731
      %v748 = vpack.c.b16 %v734, %v733
      %v749 = vpack.c.b16 %v736, %v735
      %v750 = vpack.c.b16 %v738, %v737
      %v751 = vpack.c.b16 %v740, %v739
      %v752 = vpack.c.b16 %v742, %v741
      %v753 = vpack.c.b16 %v744, %v743
      %v754 = vpack.c.b16 %v746, %v745
      %763 = vmatprep.subr.bf16.mxu0 0
      %764 = vmatpush1.bf16.msra.mxu0 %v747
      %765 = vmatprep.subr.bf16.mxu0 0
      %766 = vmatpush1.bf16.msra.mxu0 %v748
      %767 = vmatprep.subr.bf16.mxu0 0
      %768 = vmatpush1.bf16.msra.mxu0 %v749
      %769 = vmatprep.subr.bf16.mxu0 0
      %770 = vmatpush1.bf16.msra.mxu0 %v750
      %771 = vmatprep.subr.bf16.mxu0 0
      %772 = vmatpush1.bf16.msra.mxu0 %v751
      %773 = vmatprep.subr.bf16.mxu0 0
      %774 = vmatpush1.bf16.msra.mxu0 %v752
      %775 = vmatprep.subr.bf16.mxu0 0
      %776 = vmatpush1.bf16.msra.mxu0 %v753
      %777 = vmatprep.subr.bf16.mxu0 0
      %778 = vmatpush1.bf16.msra.mxu0 %v754
      %779 = vmatprep.subr.bf16.mxu0 0
      %780 = vmatpush1.bf16.msra.mxu0 0
      %781 = vmatprep.subr.bf16.mxu0 0
      %782 = vmatpush1.bf16.msra.mxu0 0
      %783 = vmatprep.subr.bf16.mxu0 0
      %784 = vmatpush1.bf16.msra.mxu0 0
      %785 = vmatprep.subr.bf16.mxu0 0
      %786 = vmatpush1.bf16.msra.mxu0 0
      %787 = vmatprep.subr.bf16.mxu0 0
      %788 = vmatpush1.bf16.msra.mxu0 0
      %789 = vmatprep.subr.bf16.mxu0 0
      %790 = vmatpush1.bf16.msra.mxu0 0
      %791 = vmatprep.subr.bf16.mxu0 0
      %792 = vmatpush1.bf16.msra.mxu0 0
      %793 = vmatprep.subr.bf16.mxu0 0
      %794 = vmatpush1.bf16.msra.mxu0 0
      %795 = vmatprep.mubr.bf16.mxu0 0
      %796 = vmatmul.mubr.bf16.gmra.mrb[0].mxu0 %v684
      %v797 = vpop.f32.mrb[0].mxu0
      %v798 = vadd.f32 %v713, %v797
      %v799 = vpop.f32.mrb[0].mxu0
      %v800 = vpop.f32.mrb[0].mxu0
      %v801 = vadd.f32 %v713, %v800
      %v802 = vpop.f32.mrb[0].mxu0
      %803 = vmatprep.mubr.bf16.mxu0 0
      %804 = vmatmul.mubr.bf16.gmra.mrb[0].mxu0 %v685
      %v805 = vpop.f32.mrb[0].mxu0
      %v806 = vadd.f32 %v713, %v805
      %v807 = vpop.f32.mrb[0].mxu0
      %v808 = vpop.f32.mrb[0].mxu0
      %v809 = vadd.f32 %v713, %v808
      %v810 = vpop.f32.mrb[0].mxu0
      %811 = vmatprep.mubr.bf16.mxu0 0
      %812 = vmatmul.mubr.bf16.gmra.mrb[0].mxu0 %v686
      %v813 = vpop.f32.mrb[0].mxu0
      %v814 = vadd.f32 %v713, %v813
      %v815 = vpop.f32.mrb[0].mxu0
      %v816 = vpop.f32.mrb[0].mxu0
      %v817 = vadd.f32 %v713, %v816
      %v818 = vpop.f32.mrb[0].mxu0
      %819 = vmatprep.mubr.bf16.mxu0 0
      %820 = vmatmul.mubr.bf16.gmra.mrb[0].mxu0 %v687
      %v821 = vpop.f32.mrb[0].mxu0
      %v822 = vadd.f32 %v713, %v821
      %v823 = vpop.f32.mrb[0].mxu0
      %v824 = vpop.f32.mrb[0].mxu0
      %v825 = vadd.f32 %v713, %v824
      %v826 = vpop.f32.mrb[0].mxu0
      %827 = vmatprep.mubr.bf16.mxu0 0
      %828 = vmatmul.mubr.bf16.gmra.mrb[0].mxu0 %v688
      %v829 = vpop.f32.mrb[0].mxu0
      %v830 = vadd.f32 %v713, %v829
      %v831 = vpop.f32.mrb[0].mxu0
      %v832 = vpop.f32.mrb[0].mxu0
      %v833 = vadd.f32 %v713, %v832
      %v834 = vpop.f32.mrb[0].mxu0
      %835 = vmatprep.mubr.bf16.mxu0 0
      %836 = vmatmul.mubr.bf16.gmra.mrb[0].mxu0 %v689
      %v837 = vpop.f32.mrb[0].mxu0
      %v838 = vadd.f32 %v713, %v837
      %v839 = vpop.f32.mrb[0].mxu0
      %v840 = vpop.f32.mrb[0].mxu0
      %v841 = vadd.f32 %v713, %v840
      %v842 = vpop.f32.mrb[0].mxu0
      %843 = vmatprep.mubr.bf16.mxu0 0
      %844 = vmatmul.mubr.bf16.gmra.mrb[0].mxu0 %v690
      %v845 = vpop.f32.mrb[0].mxu0
      %v846 = vadd.f32 %v713, %v845
      %v847 = vpop.f32.mrb[0].mxu0
      %v848 = vpop.f32.mrb[0].mxu0
      %v849 = vadd.f32 %v713, %v848
      %v850 = vpop.f32.mrb[0].mxu0
      %851 = vmatprep.mubr.bf16.mxu0 0
      %852 = vmatmul.mubr.bf16.gmra.mrb[0].mxu0 %v691
      %v853 = vpop.f32.mrb[0].mxu0
      %v854 = vadd.f32 %v713, %v853
      %v855 = vpop.f32.mrb[0].mxu0
      %v856 = vpop.f32.mrb[0].mxu0
      %v857 = vadd.f32 %v713, %v856
      %v858 = vpop.f32.mrb[0].mxu0
      %859 = vdwg.mxu0
      %v860 = vlaneseq
      %v861 = vand.u32 %v860, 127
      %vm862 = vcmp.ge.s32.totalorder %v861, 1
      %vm863 = vcmp.le.s32.totalorder %v861, 4
      %vm864 = vmand %vm862, %vm863
      %v865 = vtanh.pop %v798
      %v866 = vtanh.pop %v801
      %v867 = vtanh.pop %v806
      %v868 = vtanh.pop %v809
      %v869 = vtanh.pop %v814
      %v870 = vtanh.pop %v817
      %v871 = vtanh.pop %v822
      %v872 = vtanh.pop %v825
      %v873 = vtanh.pop %v830
      %v874 = vtanh.pop %v833
      %v875 = vtanh.pop %v838
      %v876 = vtanh.pop %v841
      %v877 = vtanh.pop %v846
      %v878 = vtanh.pop %v849
      %v879 = vtanh.pop %v854
      %v880 = vtanh.pop %v857
      %v881 = vsel %vm864, 1, 0
      %vm882 = vcmp.eq.s32.totalorder %v881, 1
      %v883 = vsel %vm882, %v865, %v798
      %v884 = vsel %vm882, %v866, %v801
      %v885 = vsel %vm882, %v867, %v806
      %v886 = vsel %vm882, %v868, %v809
      %v887 = vsel %vm882, %v869, %v814
      %v888 = vsel %vm882, %v870, %v817
      %v889 = vsel %vm882, %v871, %v822
      %v890 = vsel %vm882, %v872, %v825
      %v891 = vsel %vm882, %v873, %v830
      %v892 = vsel %vm882, %v874, %v833
      %v893 = vsel %vm882, %v875, %v838
      %v894 = vsel %vm882, %v876, %v841
      %v895 = vsel %vm882, %v877, %v846
      %v896 = vsel %vm882, %v878, %v849
      %v897 = vsel %vm882, %v879, %v854
      %v898 = vsel %vm882, %v880, %v857
      %899 = vst [vmem:[%s280] sm:$0xff] %v883
      %900 = vst [vmem:[%s280 + $0x8] sm:$0xff] %v884
      %901 = vst [vmem:[%s280 + $0x10] sm:$0xff] %v885
      %902 = vst [vmem:[%s280 + $0x18] sm:$0xff] %v886
      %903 = vst [vmem:[%s280 + $0x20] sm:$0xff] %v887
      %904 = vst [vmem:[%s280 + $0x28] sm:$0xff] %v888
      %905 = vst [vmem:[%s280 + $0x30] sm:$0xff] %v889
      %906 = vst [vmem:[%s280 + $0x38] sm:$0xff] %v890
      %907 = vst [vmem:[%s280 + $0x40] sm:$0xff] %v891
      %908 = vst [vmem:[%s280 + $0x48] sm:$0xff] %v892
      %909 = vst [vmem:[%s280 + $0x50] sm:$0xff] %v893
      %910 = vst [vmem:[%s280 + $0x58] sm:$0xff] %v894
      %911 = vst [vmem:[%s280 + $0x60] sm:$0xff] %v895
      %912 = vst [vmem:[%s280 + $0x68] sm:$0xff] %v896
      %913 = vst [vmem:[%s280 + $0x70] sm:$0xff] %v897
      %914 = vst [vmem:[%s280 + $0x78] sm:$0xff] %v898
      %s915 = smul.u32 16, %s18
      %p916 = scmp.lt.s32.totalorder %s915, 31
      %s917 = scalar_select %p916, %s915, 31
      %s918 = smul.addr %s917, 8
      %s919 = scalar_lea.vmem %s7, %s918
      // Predicated region
      $region49: #{ppo_forward.1} parent=47 // pred_check
        %p920 = pneg %p188
      $region50: #{ppo_forward.1} parent=47 // pred_check_branch
        %922 = sbr.rel (%p920) target = $region52
      $region51: #{ppo_forward.1} parent=47 // pred_region
        %s923 = smul.u32 16, %s18
      $region52: #{ppo_forward.1} parent=47 // pred_fallthru
        _
    $region48: #{ppo_forward.1} parent=5 // pred_fallthru
      _
    %p924 = scmp.le.s32.totalorder 2, %s13
    // Predicated region
    $region53: #{ppo_forward.1} parent=5 // pred_check
      %p925 = pneg %p924
    $region54: #{ppo_forward.1} parent=5 // pred_check_branch
      %927 = sbr.rel (%p925) target = $region56
    $region55: #{ppo_forward.1} parent=5 // pred_region
      %s928 = ssub.s32 %s13, 2
      // Predicated region
      $region57: #{ppo_forward.1} parent=55 // pred_check
        %p929 = pneg %p194
      $region58: #{ppo_forward.1} parent=55 // pred_check_branch
        %931 = sbr.rel (%p929) target = $region60
      $region59: #{ppo_forward.1} parent=55 // pred_region
        %s932 = smul.u32 16, %s19
        %p933 = scmp.lt.s32.totalorder %s932, 31
        %s934 = scalar_select %p933, %s932, 31
        %s935 = smul.addr %s934, 8
        %s936 = scalar_lea.vmem %s7, %s935
      $region60: #{ppo_forward.1} parent=55 // pred_fallthru
        _
    $region56: #{ppo_forward.1} parent=5 // pred_fallthru
      _
  $region6: #{ppo_forward.1} parent=0 // loop_footer
    %s17 = sadd.s32 1, %s13
  $region7: #{ppo_forward.1} parent=0 // loop_footer_branch
    %12 = sbr.rel target = $region3
  $region8: #{ppo_forward.1} parent=0 // loop_exit
    _

</llo_original>
